<compile_context>
chip_gen: v7x
topology: tpu7x:2x2x1
jax: 0.10.0
libtpu: 0.0.40
codegen_flags: <defaults>
</compile_context>

<pallas_src>
import functools

import jax
import jax.numpy as jnp
from jax.experimental import pallas as pl
from jax.experimental.pallas import tpu as pltpu


def _round_up(x, m):
    return ((x + m - 1) // m) * m


def _categorical_logits_kernel(x_ref, w_ref, b_ref, out_ref, *, num_valid):
    # x: (TB, D) f32, w: (D, Kp) bf16 (pre-transposed), b: (1, Kp) f32.
    x = x_ref[...].astype(jnp.bfloat16)            # bf16 MXU operands, f32 acc
    y = jnp.dot(x, w_ref[...], preferred_element_type=jnp.float32) + b_ref[...]
    kp = y.shape[-1]
    if num_valid < kp:                              # static branch: mask padded classes
        lane = jax.lax.broadcasted_iota(jnp.int32, (1, kp), 1)
        y = jnp.where(lane < num_valid, y, jnp.float32(-1e30))
    # Numerically stable log-softmax -> normalized Categorical logits.
    m = jnp.max(y, axis=-1, keepdims=True)
    e = jnp.exp(y - m)
    s = jnp.sum(e, axis=-1, keepdims=True)
    out_ref[...] = (y - (m + jnp.log(s))).astype(out_ref.dtype)


def prepare_categorical_params(weight, bias):
    """One-time prep of the static nn.Linear parameters.

    weight: (K, D) as stored by nn.Linear; bias: (K,).
    Returns (w_dk, b_1kp, K): weight padded to Kp = round_up(K, 128) classes,
    transposed to the MXU-native (D, Kp) RHS layout and cast to bf16; bias
    zero-padded to (1, Kp) in f32.
    """
    K, D = weight.shape
    assert bias.shape == (K,)
    Kp = _round_up(K, 128)
    w_dk = jnp.pad(weight.astype(jnp.float32), ((0, Kp - K), (0, 0))).T
    w_dk = w_dk.astype(jnp.bfloat16)                               # (D, Kp)
    b_1kp = jnp.pad(bias.astype(jnp.float32), (0, Kp - K)).reshape(1, Kp)
    return w_dk, b_1kp, K


def categorical_logits(x, w_dk, b_1kp, num_classes, *, tile_b=2048):
    """Normalized Categorical logits, lane-padded to (B, Kp). x: (B, D) f32."""
    B, D = x.shape
    D2, Kp = w_dk.shape
    assert D == D2 and b_1kp.shape == (1, Kp)

    # Tile over B only; K stays un-tiled (softmax reduction axis).
    B8 = _round_up(max(B, 1), 8)
    TB = min(_round_up(max(tile_b, 8), 8), B8)
    n_steps = pl.cdiv(B, TB)
    # Keep >=2 "parallel" grid steps for dual-TensorCore sharding (v7x) when
    # the batch is large enough to be worth splitting.
    if n_steps == 1 and B8 >= 1024:
        TB = _round_up(pl.cdiv(B8, 2), 8)
        n_steps = pl.cdiv(B, TB)

    # VMEM demand: double-buffered x/out tiles (f32) + replicated weight/bias,
    # plus headroom for compiler-internal scratch. Capped well below physical
    # VMEM on all generations (v7x: 64 MiB/core).
    vmem_limit = min(
        2 * TB * (D + Kp) * 4            # double-buffered x + out tiles (f32)
        + 2 * (Kp * D * 2 + Kp * 4)      # weight (bf16) + bias (f32)
        + (8 << 20),                     # slack
        32 << 20,
    )

    return pl.pallas_call(
        functools.partial(_categorical_logits_kernel, num_valid=num_classes),
        out_shape=jax.ShapeDtypeStruct((B, Kp), jnp.float32),
        grid_spec=pltpu.PrefetchScalarGridSpec(
            num_scalar_prefetch=0,
            grid=(n_steps,),
            in_specs=[
                # x tile, pipelined over B (ragged last block handled by Pallas).
                pl.BlockSpec((TB, D), lambda i: (i, 0)),
                # Weight / bias: constant-index replicated blocks (fetched once,
                # not re-DMA'd per grid step).
                pl.BlockSpec((D, Kp), lambda i: (0, 0)),
                pl.BlockSpec((1, Kp), lambda i: (0, 0)),
            ],
            out_specs=pl.BlockSpec((TB, Kp), lambda i: (i, 0)),
        ),
        compiler_params=pltpu.CompilerParams(
            dimension_semantics=("parallel",),      # dual-TC sharding on v7x
            vmem_limit_bytes=vmem_limit,
        ),
    )(x, w_dk, b_1kp)


def categorical_forward(x, weight, bias, *, tile_b=2048, unpad_output=True):
    """Drop-in forward: Categorical(logits=linear(x)).logits, shape (B, K).

    With unpad_output=False the lane-padded (B, Kp) logits are returned and the
    extra HBM slice pass is skipped; padded lanes hold ~-1e30 (probability 0)
    so downstream sampling/argmax can simply ignore lanes >= K.
    """
    w_dk, b_1kp, K = prepare_categorical_params(weight, bias)
    logits = categorical_logits(x, w_dk, b_1kp, K, tile_b=tile_b)
    return logits[:, :K] if unpad_output else logits


def _orthogonal_init(key, shape, gain=0.01, dtype=jnp.float32):
    """Deterministic orthogonal init (mirrors nn.init.orthogonal_ with gain)."""
    rows, cols = shape
    n = max(rows, cols)
    a = jax.random.normal(key, (n, n), dtype=jnp.float32)
    q, r = jnp.linalg.qr(a)
    q = q * jnp.sign(jnp.diag(r))  # sign-fix, as PyTorch does
    return (gain * q[:rows, :cols]).astype(dtype)


def _reference(x, weight, bias):
    y = x @ weight.T + bias
    logits = y - jax.scipy.special.logsumexp(y, axis=-1, keepdims=True)
    probs = jax.nn.softmax(y, axis=-1)
    return logits, probs


# TODO(synk): sampling / log_prob / entropy of the Categorical distribution are
# left to the caller (trivially computable from the normalized logits).

if __name__ == "__main__":
    num_inputs = 32     # hidden size
    num_outputs = 8     # number of discrete actions

    key = jax.random.PRNGKey(0)
    k_x, k_w, k_x2 = jax.random.split(key, 3)

    weight = _orthogonal_init(k_w, (num_outputs, num_inputs), gain=0.01)  # (K, D)
    bias = jnp.zeros((num_outputs,), dtype=jnp.float32)                   # constant_(0)

    # --- Small case (module-sized): batch=4, single ragged block ---
    x = jax.random.normal(k_x, (4, num_inputs), dtype=jnp.float32)
    logits = categorical_forward(x, weight, bias)
    jax.block_until_ready(logits)
    probs = jnp.exp(logits)

    logits_ref, probs_ref = _reference(x, weight, bias)
    assert logits.shape == (4, num_outputs)
    assert jnp.allclose(logits, logits_ref, atol=1e-3, rtol=1e-3)
    assert jnp.allclose(probs, probs_ref, atol=1e-3, rtol=1e-3)

    # --- Larger batch: 2 parallel grid steps, padded-output fast path ---
    x2 = jax.random.normal(k_x2, (1024, num_inputs), dtype=jnp.float32)
    w_dk, b_1kp, K = prepare_categorical_params(weight, bias)   # one-time prep
    logits2_p = categorical_logits(x2, w_dk, b_1kp, K)          # (1024, 128) padded
    jax.block_until_ready(logits2_p)

    logits2_ref, probs2_ref = _reference(x2, weight, bias)
    assert jnp.allclose(logits2_p[:, :K], logits2_ref, atol=1e-3, rtol=1e-3)
    assert jnp.allclose(jnp.exp(logits2_p[:, :K]), probs2_ref, atol=1e-3, rtol=1e-3)
    # Padded classes carry (numerically) zero probability.
    assert jnp.all(jnp.exp(logits2_p[:, K:]) <= 1e-30)

    print("KERNEL_OK")
</pallas_src>

<mosaic_0001>
module attributes {stable_mosaic.version = 11 : i64} {
  func.func @_categorical_logits_kernel(%arg0: i32, %arg1: memref<8x32xf32, #tpu.memory_space<vmem>>, %arg2: memref<32x128xbf16, #tpu.memory_space<vmem>>, %arg3: memref<1x128xf32, #tpu.memory_space<vmem>>, %arg4: memref<8x128xf32, #tpu.memory_space<vmem>>) attributes {dimension_semantics = [#tpu.dimension_semantics<parallel>], iteration_bounds = array<i64: 1>, scalar_prefetch = 0 : i64, scratch_operands = 0 : i64, tpu.core_type = #tpu.core_type<tc>, window_params = [{transform_indices = @transform_0, window_bounds = array<i64: 8, 32>}, {pipeline_mode = #tpu.pipeline_mode<synchronous>, transform_indices = @transform_1, window_bounds = array<i64: 32, 128>}, {pipeline_mode = #tpu.pipeline_mode<synchronous>, transform_indices = @transform_2, window_bounds = array<i64: 1, 128>}, {transform_indices = @transform_3, window_bounds = array<i64: 8, 128>}]} {
    %c0 = arith.constant 0 : index
    %c0_0 = arith.constant 0 : index
    %0 = vector.load %arg1[%c0, %c0_0] : memref<8x32xf32, #tpu.memory_space<vmem>>, vector<8x32xf32>
    %1 = arith.truncf %0 : vector<8x32xf32> to vector<8x32xbf16>
    %c0_1 = arith.constant 0 : index
    %c0_2 = arith.constant 0 : index
    %2 = vector.load %arg2[%c0_1, %c0_2] : memref<32x128xbf16, #tpu.memory_space<vmem>>, vector<32x128xbf16>
    %cst = arith.constant dense<0.000000e+00> : vector<8x128xf32>
    %3 = tpu.matmul %1, %2, %cst {dimension_numbers = #tpu.dot_dimension_numbers<[1], [0], [0], [1], [0, 0, 1, 1], [], []>} : vector<8x32xbf16>, vector<32x128xbf16>, vector<8x128xf32> -> vector<8x128xf32>
    %c0_3 = arith.constant 0 : index
    %c0_4 = arith.constant 0 : index
    %4 = vector.load %arg3[%c0_3, %c0_4] : memref<1x128xf32, #tpu.memory_space<vmem>>, vector<1x128xf32>
    %5 = vector.broadcast %4 : vector<1x128xf32> to vector<8x128xf32>
    %6 = arith.addf %3, %5 : vector<8x128xf32>
    %7 = tpu.iota {dimensions = array<i32: 1>} : vector<1x128xi32>
    %c8_i32 = arith.constant 8 : i32
    %8 = vector.broadcast %c8_i32 : i32 to vector<1x128xi32>
    %9 = arith.cmpi slt, %7, %8 : vector<1x128xi32>
    %cst_5 = arith.constant -1.000000e+30 : f32
    %10 = vector.shape_cast %9 : vector<1x128xi1> to vector<1x128xi1>
    %11 = vector.broadcast %10 : vector<1x128xi1> to vector<8x128xi1>
    %12 = vector.broadcast %cst_5 : f32 to vector<8x128xf32>
    %13 = arith.select %11, %6, %12 : vector<8x128xi1>, vector<8x128xf32>
    %cst_6 = arith.constant dense<0xFF800000> : vector<8xf32>
    %14 = vector.multi_reduction <maximumf>, %13, %cst_6 [1] : vector<8x128xf32> to vector<8xf32>
    %15 = vector.shape_cast %14 : vector<8xf32> to vector<8x1xf32>
    %16 = vector.broadcast %15 : vector<8x1xf32> to vector<8x128xf32>
    %17 = arith.subf %13, %16 : vector<8x128xf32>
    %18 = math.exp %17 : vector<8x128xf32>
    %cst_7 = arith.constant dense<0.000000e+00> : vector<8xf32>
    %19 = vector.multi_reduction <add>, %18, %cst_7 [1] : vector<8x128xf32> to vector<8xf32>
    %20 = vector.shape_cast %19 : vector<8xf32> to vector<8x1xf32>
    %21 = math.log %20 : vector<8x1xf32>
    %22 = arith.addf %15, %21 : vector<8x1xf32>
    %23 = vector.broadcast %22 : vector<8x1xf32> to vector<8x128xf32>
    %24 = arith.subf %13, %23 : vector<8x128xf32>
    %c0_8 = arith.constant 0 : index
    %c0_9 = arith.constant 0 : index
    %25 = vector.load %arg4[%c0_8, %c0_9] : memref<8x128xf32, #tpu.memory_space<vmem>>, vector<8x128xf32>
    tpu.vector_store %arg4[%c0_8, %c0_9], %24 {strides = array<i32>} : memref<8x128xf32, #tpu.memory_space<vmem>>, vector<8x128xf32>,
    return
  }
  func.func @transform_0(%arg0: i32) -> (i32, i32) {
    %c0_i32 = arith.constant 0 : i32
    %c0_i32_0 = arith.constant 0 : i32
    return %arg0, %c0_i32 : i32, i32
  }
  func.func @transform_1(%arg0: i32) -> (i32, i32) {
    %c0_i32 = arith.constant 0 : i32
    %c0_i32_0 = arith.constant 0 : i32
    %c0_i32_1 = arith.constant 0 : i32
    return %c0_i32, %c0_i32_0 : i32, i32
  }
  func.func @transform_2(%arg0: i32) -> (i32, i32) {
    %c0_i32 = arith.constant 0 : i32
    %c0_i32_0 = arith.constant 0 : i32
    %c0_i32_1 = arith.constant 0 : i32
    return %c0_i32, %c0_i32_0 : i32, i32
  }
  func.func @transform_3(%arg0: i32) -> (i32, i32) {
    %c0_i32 = arith.constant 0 : i32
    %c0_i32_0 = arith.constant 0 : i32
    return %arg0, %c0_i32 : i32, i32
  }
}

</mosaic_0001>

<llo_original>
// kernel: tpu_custom_call.1
$region0: #{tpu_custom_call.1}
  #allocation0 [shape = 'u32[]', space=smem, size = 0x4, offset = 0x4, fixed_abs, tag = 'smem constant byte address 0x4 - core index']
  #allocation1 [shape = 'u32[144,128]{1,0:T(1,128)}', space=vmem, size = 0x12000, scoped, tag = 'internal scratch']
  %s0 = inlined_call_operand.hbm [shape: f32[4,32], index: 0, kind: input, shape index: {}]
  %s1 = inlined_call_operand.hbm [shape: bf16[32,128], index: 1, kind: input, shape index: {}]
  %s2 = inlined_call_operand.vmem [shape: f32[1,128], index: 2, kind: input, shape index: {}]
  %s3 = inlined_call_operand.hbm [shape: f32[4,128], index: 3, kind: output, shape index: {}]
  %s4 = sld [smem:[#allocation0]]
  $region30: #{tpu_custom_call.1} parent=0
    _
  %s6 = ssub.s32 1, %s4
  %s7 = scalar_select 0, %s6, %s4
  $region1: #{tpu_custom_call.1} parent=0
    #allocation2 [shape = 'u8[4096]{0}', space=vmem, size = 0x1000, scoped, tag = 'input window, operand 0, single buffered']
    #allocation3 [shape = 's32[1]{0}', space=sflag, size = 0x4, scoped, tag = 'scoped memory for tpu_custom_call.1']
    #allocation4 [shape = 's32[1]{0}', space=sflag, size = 0x4, scoped, tag = 'scoped memory for tpu_custom_call.1']
    #allocation5 [shape = 'u8[8192]{0}', space=vmem, size = 0x2000, scoped, tag = 'input window, operand 1, single buffered']
    #allocation6 [shape = 's32[1]{0}', space=sflag, size = 0x4, scoped, tag = 'scoped memory for tpu_custom_call.1']
    #allocation7 [shape = 'u8[4096]{0}', space=vmem, size = 0x1000, scoped, tag = 'output window, operand 0, single buffered']
    %8 = vsyncpa [#allocation3], 0
    %9 = vsyncpa [#allocation6], 0
    %10 = vsyncpa [#allocation4], 0
    // Predicated region
    $region2: #{tpu_custom_call.1} parent=1 // pred_check
      _
    $region3: #{tpu_custom_call.1} parent=1 // pred_check_branch
      %12 = sbr.rel (0) target = $region5
    $region4: #{tpu_custom_call.1} parent=1 // pred_region
      %s14 = ssub.s32 128, 64
      %15 = vsyncadd [#allocation3], %s14
      %s16 = sshll.u32 [#allocation2], 4
      %s17 = int_to_ptr.vmem [resolvable:$true] %s16
      %22 = dma.hbm_to_vmem [thread:$0]  %s0, 64, %s17, [#allocation3], 64, 64, 4
    $region5: #{tpu_custom_call.1} parent=1 // pred_fallthru
      _
    // Predicated region
    $region6: #{tpu_custom_call.1} parent=1 // pred_check
      _
    $region7: #{tpu_custom_call.1} parent=1 // pred_check_branch
      %24 = sbr.rel (0) target = $region9
    $region8: #{tpu_custom_call.1} parent=1 // pred_region
      %s26 = ssub.s32 256, 256
      %27 = vsyncadd [#allocation6], %s26
      %s28 = sshll.u32 [#allocation5], 4
      %s29 = int_to_ptr.vmem [resolvable:$true] %s28
      %34 = dma.hbm_to_vmem [thread:$0]  %s1, 256, %s29, [#allocation6], 64, 64, 4
    $region9: #{tpu_custom_call.1} parent=1 // pred_fallthru
      _
    // Predicated region
    $region10: #{tpu_custom_call.1} parent=1 // pred_check
      _
    $region11: #{tpu_custom_call.1} parent=1 // pred_check_branch
      %36 = sbr.rel (0) target = $region13
    $region12: #{tpu_custom_call.1} parent=1 // pred_region
      _
    $region13: #{tpu_custom_call.1} parent=1 // pred_fallthru
      _
    // Predicated region
    $region14: #{tpu_custom_call.1} parent=1 // pred_check
      _
    $region15: #{tpu_custom_call.1} parent=1 // pred_check_branch
      %38 = sbr.rel (0) target = $region17
    $region16: #{tpu_custom_call.1} parent=1 // pred_region
      %39 = dma.done [#allocation3], 128
    $region17: #{tpu_custom_call.1} parent=1 // pred_fallthru
      _
    // Predicated region
    $region18: #{tpu_custom_call.1} parent=1 // pred_check
      _
    $region19: #{tpu_custom_call.1} parent=1 // pred_check_branch
      %41 = sbr.rel (0) target = $region21
    $region20: #{tpu_custom_call.1} parent=1 // pred_region
      %42 = dma.done [#allocation6], 256
    $region21: #{tpu_custom_call.1} parent=1 // pred_fallthru
      _
    %v44 = vld [vmem:[#allocation2] sm:$0xff]
    %v45 = vpack.c.bf16 %v44, %v44
    %v46 = vld [vmem:[#allocation5] sm:$0xf]
    %v47 = vld [vmem:[#allocation5 + $0x4] sm:$0xf]
    %v48 = vld [vmem:[#allocation5 + $0x8] sm:$0xf]
    %v49 = vld [vmem:[#allocation5 + $0xc] sm:$0xf]
    %v50 = vld [vmem:[%s2] sm:$0x1]
    %v52 = vlaneseq
    %v53 = vshrl.u32 %v52, 7
    %v54 = vsub.s32 0, %v53
    %v55 = vrot.slane %v50, %v54
    %v61 = vunpack.c.l.b16 %v46
    %v62 = vunpack.c.l.b16 %v47
    %v63 = vunpack.c.l.b16 %v48
    %v64 = vunpack.c.l.b16 %v49
    %v65 = vpack.c.b16 %v62, %v61
    %v66 = vpack.c.b16 %v64, %v63
    %vm69 = vcmask 261120
    %v71 = vsel %vm69, %v45, 0
    %73 = vmatprep.subr.bf16.mxu0 0
    %74 = vmatpush1.bf16.msra.mxu0 %v65
    %75 = vmatprep.subr.bf16.mxu0 0
    %76 = vmatpush1.bf16.msra.mxu0 %v66
    %77 = vmatprep.subr.bf16.mxu0 0
    %78 = vmatpush1.bf16.msra.mxu0 0
    %79 = vmatprep.subr.bf16.mxu0 0
    %80 = vmatpush1.bf16.msra.mxu0 0
    %81 = vmatprep.subr.bf16.mxu0 0
    %82 = vmatpush1.bf16.msra.mxu0 0
    %83 = vmatprep.subr.bf16.mxu0 0
    %84 = vmatpush1.bf16.msra.mxu0 0
    %85 = vmatprep.subr.bf16.mxu0 0
    %86 = vmatpush1.bf16.msra.mxu0 0
    %87 = vmatprep.subr.bf16.mxu0 0
    %88 = vmatpush1.bf16.msra.mxu0 0
    %89 = vmatprep.subr.bf16.mxu0 0
    %90 = vmatpush1.bf16.msra.mxu0 0
    %91 = vmatprep.subr.bf16.mxu0 0
    %92 = vmatpush1.bf16.msra.mxu0 0
    %93 = vmatprep.subr.bf16.mxu0 0
    %94 = vmatpush1.bf16.msra.mxu0 0
    %95 = vmatprep.subr.bf16.mxu0 0
    %96 = vmatpush1.bf16.msra.mxu0 0
    %97 = vmatprep.subr.bf16.mxu0 0
    %98 = vmatpush1.bf16.msra.mxu0 0
    %99 = vmatprep.subr.bf16.mxu0 0
    %100 = vmatpush1.bf16.msra.mxu0 0
    %101 = vmatprep.subr.bf16.mxu0 0
    %102 = vmatpush1.bf16.msra.mxu0 0
    %103 = vmatprep.subr.bf16.mxu0 0
    %104 = vmatpush1.bf16.msra.mxu0 0
    %105 = vmatprep.mubr.bf16.mxu0 0
    %106 = vmatmul.mubr.bf16.gmra.mrb[0].mxu0 %v71
    %v107 = vpop.f32.mrb[0].mxu0
    %v108 = vadd.f32 %v55, %v107
    %v109 = vpop.f32.mrb[0].mxu0
    %v110 = vpop.f32.mrb[0].mxu0
    %v111 = vpop.f32.mrb[0].mxu0
    %112 = vdwg.mxu0
    %v113 = vlaneseq
    %v114 = vand.u32 %v113, 127
    %vm115 = vcmp.lt.s32.totalorder %v114, 8
    %v116 = vsel %vm115, 1, 0
    %vm117 = vcmp.eq.s32.totalorder %v116, 1
    %v118 = vsel %vm117, %v108, -1e+30
    %119 = vmax.xlane.f32.xlu0 %v118
    %v120 = vpop.xlane.xlu0 %119
    %v121 = vsub.f32 %v118, %v120
    %v122 = vmul.f32 %v121, 1.442695
    %v123 = vpow.pop %v122
    %124 = vadd.xlane.f32.xlu0 %v123
    %v125 = vpop.xlane.xlu0 %124
    %v126 = vlog2.pop %v125
    %v127 = vmul.f32 %v126, 0.6931472
    %v128 = vadd.f32 %v120, %v127
    %v129 = vsub.f32 %v118, %v128
    %130 = vst [vmem:[#allocation7] sm:$0xff] %v129
    // Predicated region
    $region22: #{tpu_custom_call.1} parent=1 // pred_check
      _
    $region23: #{tpu_custom_call.1} parent=1 // pred_check_branch
      %132 = sbr.rel (0) target = $region25
    $region24: #{tpu_custom_call.1} parent=1 // pred_region
      %s134 = ssub.s32 128, 64
      %135 = vsyncadd [#allocation4], %s134
      %s136 = sshll.u32 [#allocation7], 4
      %s137 = int_to_ptr.vmem [resolvable:$true] %s136
      %142 = dma.vmem_to_hbm [thread:$0]  %s137, 64, %s3, [#allocation4], 64, 64, 4
    $region25: #{tpu_custom_call.1} parent=1 // pred_fallthru
      _
    // Predicated region
    $region26: #{tpu_custom_call.1} parent=1 // pred_check
      _
    $region27: #{tpu_custom_call.1} parent=1 // pred_check_branch
      %144 = sbr.rel (0) target = $region29
    $region28: #{tpu_custom_call.1} parent=1 // pred_region
      %145 = dma.done [#allocation4], 128
    $region29: #{tpu_custom_call.1} parent=1 // pred_fallthru
      _
    %146 = vsyncpa [#allocation3], 1
    %147 = vsyncpa [#allocation6], 1
    %148 = vsyncpa [#allocation4], 1

</llo_original>
